<compile_context>
chip_gen: v7x
topology: tpu7x:2x2x1
jax: 0.10.0
libtpu: 0.0.40
codegen_flags: <defaults>
</compile_context>

<pallas_src>
import functools

import jax
import jax.numpy as jnp
from jax import lax
from jax.experimental import pallas as pl
from jax.experimental.pallas import tpu as pltpu


def _embed_kernel(idx_ref, table_ref, out_ref, *, vpad):
    # idx_ref:   (tb, 1)     int32   -- token ids for this block
    # table_ref: (vpad, D)   f32/bf16 -- full (padded) merged embedding table
    # out_ref:   (tb, D)     same dtype as table
    ids = idx_ref[...]                                       # (tb, 1)
    tb = ids.shape[0]
    iota = lax.broadcasted_iota(jnp.int32, (tb, vpad), 1)    # (tb, vpad)
    # Exact 0/1 one-hot; cast is lossless in bf16 or f32.
    onehot = (ids == iota).astype(table_ref.dtype)           # (tb, vpad)
    acc = jnp.dot(onehot, table_ref[...],
                  preferred_element_type=jnp.float32)        # (tb, D) f32 acc
    out_ref[...] = acc.astype(out_ref.dtype)


def _round_up(n, m):
    return pl.cdiv(n, m) * m


def prepare_table(table, vocab_align=128):
    """Pad the (V, D) table to a 128-aligned vocab once, at init time.

    Padded rows are zero and are never selected by valid indices.
    """
    v, d = table.shape
    v_pad = _round_up(v, vocab_align)
    if v_pad != v:
        table = jnp.pad(table, ((0, v_pad - v), (0, 0)))
    return table


def _make_table_spec(v_pad, d, single_buffer):
    if single_buffer and hasattr(pl, "Buffered"):
        try:
            return pl.BlockSpec((v_pad, d), lambda i: (0, 0),
                                pipeline_mode=pl.Buffered(1))
        except TypeError:
            pass
    return pl.BlockSpec((v_pad, d), lambda i: (0, 0))


def merged_codebook_lookup(x, table, *, token_block=256):
    """Embedding lookup: returns table[x] with shape x.shape + (D,)."""
    orig_shape = x.shape
    idx_flat = x.reshape(-1).astype(jnp.int32)
    n_tokens = idx_flat.shape[0]

    # Pad token count to a multiple of the block size.
    n_pad = _round_up(max(n_tokens, 1), token_block)
    if n_pad != n_tokens:
        idx_flat = jnp.pad(idx_flat, (0, n_pad - n_tokens))
    idx2d = idx_flat.reshape(n_pad, 1)

    # Pad vocab rows to a 128-aligned contraction dim (no-op if pre-padded).
    table_p = prepare_table(table)
    v_pad, d = table_p.shape

    grid = (n_pad // token_block,)

    # Explicit VMEM budget: table (assume worst-case 2 buffers), double-buffered
    # idx + out tiles, plus headroom for the one-hot intermediate.
    itemsize = jnp.dtype(table_p.dtype).itemsize
    vmem_needed = (2 * v_pad * d * itemsize
                   + 2 * token_block * 4
                   + 2 * token_block * d * itemsize
                   + token_block * v_pad * 4)
    vmem_limit = int(min(128 * 1024 * 1024,
                         max(vmem_needed + (8 << 20), 16 << 20)))

    def call(single_buffer):
        return pl.pallas_call(
            functools.partial(_embed_kernel, vpad=v_pad),
            out_shape=jax.ShapeDtypeStruct((n_pad, d), table_p.dtype),
            grid_spec=pltpu.PrefetchScalarGridSpec(
                num_scalar_prefetch=0,
                grid=grid,
                in_specs=[
                    pl.BlockSpec((token_block, 1), lambda i: (i, 0)),
                    _make_table_spec(v_pad, d, single_buffer),
                ],
                out_specs=pl.BlockSpec((token_block, d), lambda i: (i, 0)),
            ),
            compiler_params=pltpu.CompilerParams(
                dimension_semantics=("parallel",),
                vmem_limit_bytes=vmem_limit),
        )(idx2d, table_p)

    try:
        out = call(single_buffer=True)
    except Exception:
        # Fallback if single-buffered pipeline_mode is unsupported in this
        # environment: default (double-buffered) resident table.
        out = call(single_buffer=False)

    out = out[:n_tokens]
    return out.reshape(*orig_shape, d)


def build_merged_table(codebooks, num_special_tokens, key):
    """Replicates MergedCodebook.__init__ weight construction."""
    n_levels, num_embeddings, embed_dim = codebooks.shape
    total = n_levels * num_embeddings + num_special_tokens
    # nn.Embedding weight.data.uniform_(-1/total, 1/total)
    base = jax.random.uniform(
        key, (total, embed_dim), dtype=jnp.float32,
        minval=-1.0 / total, maxval=1.0 / total)
    # Rows [0, n_levels*num_embeddings) are overwritten with the codebooks,
    # level by level; special-token rows keep the uniform init.
    merged = base.at[: n_levels * num_embeddings].set(
        codebooks.reshape(n_levels * num_embeddings, embed_dim).astype(jnp.float32))
    # Note: padding_idx only affects gradients in PyTorch (the uniform_ call
    # overwrites the zeroed pad row anyway), so forward is a plain gather.
    return merged


if __name__ == "__main__":
    key = jax.random.PRNGKey(0)
    k_cb, k_w, k_x, k_x2 = jax.random.split(key, 4)

    # Module config (small, deterministic).
    n_levels, num_embeddings, embed_dim = 3, 16, 128
    num_special_tokens = 4
    total_embeddings = n_levels * num_embeddings + num_special_tokens
    pad_token_id = total_embeddings - 1

    codebooks = jax.random.normal(
        k_cb, (n_levels, num_embeddings, embed_dim), dtype=jnp.float32)
    table = build_merged_table(codebooks, num_special_tokens, k_w)

    # Hoisted out of the per-call path: pad the table once at "init" time.
    table_padded = prepare_table(table)

    # 1) Small input (single grid step): (batch=2, seq=8).
    x = jax.random.randint(k_x, (2, 8), 0, total_embeddings, dtype=jnp.int32)
    out = jax.block_until_ready(merged_codebook_lookup(x, table_padded))
    ref = jnp.take(table, x, axis=0)
    assert out.shape == (2, 8, embed_dim), out.shape
    assert out.dtype == jnp.float32
    assert jnp.allclose(out, ref, atol=1e-6), float(jnp.max(jnp.abs(out - ref)))

    # 2) Multi-block grid + token-padding path: (batch=2, seq=200) -> 400
    #    tokens -> padded to 512 -> grid of 2 steps.
    x2 = jax.random.randint(k_x2, (2, 200), 0, total_embeddings, dtype=jnp.int32)
    out2 = jax.block_until_ready(merged_codebook_lookup(x2, table_padded))
    ref2 = jnp.take(table, x2, axis=0)
    assert out2.shape == (2, 200, embed_dim), out2.shape
    assert jnp.allclose(out2, ref2, atol=1e-6), float(jnp.max(jnp.abs(out2 - ref2)))

    print("KERNEL_OK")
</pallas_src>

<mosaic_0001>
module attributes {stable_mosaic.version = 11 : i64} {
  func.func @_embed_kernel(%arg0: i32, %arg1: memref<256x1xi32, #tpu.memory_space<vmem>>, %arg2: memref<128x128xf32, #tpu.memory_space<vmem>>, %arg3: memref<256x128xf32, #tpu.memory_space<vmem>>) attributes {dimension_semantics = [#tpu.dimension_semantics<parallel>], iteration_bounds = array<i64: 1>, scalar_prefetch = 0 : i64, scratch_operands = 0 : i64, tpu.core_type = #tpu.core_type<tc>, window_params = [{transform_indices = @transform_0, window_bounds = array<i64: 256, 1>}, {pipeline_mode = #tpu.pipeline_mode<synchronous>, transform_indices = @transform_1, window_bounds = array<i64: 128, 128>}, {transform_indices = @transform_2, window_bounds = array<i64: 256, 128>}]} {
    %c0 = arith.constant 0 : index
    %c0_0 = arith.constant 0 : index
    %0 = vector.load %arg1[%c0, %c0_0] : memref<256x1xi32, #tpu.memory_space<vmem>>, vector<256x1xi32>
    %1 = tpu.iota {dimensions = array<i32: 1>} : vector<256x128xi32>
    %2 = vector.broadcast %0 : vector<256x1xi32> to vector<256x128xi32>
    %3 = arith.cmpi eq, %2, %1 : vector<256x128xi32>
    %4 = arith.extui %3 : vector<256x128xi1> to vector<256x128xi32>
    %5 = arith.sitofp %4 : vector<256x128xi32> to vector<256x128xf32>
    %c0_1 = arith.constant 0 : index
    %c0_2 = arith.constant 0 : index
    %6 = vector.load %arg2[%c0_1, %c0_2] : memref<128x128xf32, #tpu.memory_space<vmem>>, vector<128x128xf32>
    %cst = arith.constant dense<0.000000e+00> : vector<256x128xf32>
    %7 = tpu.matmul %5, %6, %cst {dimension_numbers = #tpu.dot_dimension_numbers<[1], [0], [0], [1], [0, 0, 1, 1], [], []>} : vector<256x128xf32>, vector<128x128xf32>, vector<256x128xf32> -> vector<256x128xf32>
    %c0_3 = arith.constant 0 : index
    %c0_4 = arith.constant 0 : index
    %8 = vector.load %arg3[%c0_3, %c0_4] : memref<256x128xf32, #tpu.memory_space<vmem>>, vector<256x128xf32>
    tpu.vector_store %arg3[%c0_3, %c0_4], %7 {strides = array<i32>} : memref<256x128xf32, #tpu.memory_space<vmem>>, vector<256x128xf32>,
    return
  }
  func.func @transform_0(%arg0: i32) -> (i32, i32) {
    %c0_i32 = arith.constant 0 : i32
    %c0_i32_0 = arith.constant 0 : i32
    return %arg0, %c0_i32 : i32, i32
  }
  func.func @transform_1(%arg0: i32) -> (i32, i32) {
    %c0_i32 = arith.constant 0 : i32
    %c0_i32_0 = arith.constant 0 : i32
    %c0_i32_1 = arith.constant 0 : i32
    return %c0_i32, %c0_i32_0 : i32, i32
  }
  func.func @transform_2(%arg0: i32) -> (i32, i32) {
    %c0_i32 = arith.constant 0 : i32
    %c0_i32_0 = arith.constant 0 : i32
    return %arg0, %c0_i32 : i32, i32
  }
}

module attributes {stable_mosaic.version = 11 : i64} {
  func.func @_embed_kernel(%arg0: i32, %arg1: memref<256x1xi32, #tpu.memory_space<vmem>>, %arg2: memref<128x128xf32, #tpu.memory_space<vmem>>, %arg3: memref<256x128xf32, #tpu.memory_space<vmem>>) attributes {dimension_semantics = [#tpu.dimension_semantics<parallel>], iteration_bounds = array<i64: 1>, scalar_prefetch = 0 : i64, scratch_operands = 0 : i64, tpu.core_type = #tpu.core_type<tc>, window_params = [{transform_indices = @transform_0, window_bounds = array<i64: 256, 1>}, {pipeline_mode = #tpu.pipeline_mode<synchronous>, transform_indices = @transform_1, window_bounds = array<i64: 128, 128>}, {transform_indices = @transform_2, window_bounds = array<i64: 256, 128>}]} {
    %c0 = arith.constant 0 : index
    %c0_0 = arith.constant 0 : index
    %0 = vector.load %arg1[%c0, %c0_0] : memref<256x1xi32, #tpu.memory_space<vmem>>, vector<256x1xi32>
    %1 = tpu.iota {dimensions = array<i32: 1>} : vector<256x128xi32>
    %2 = vector.broadcast %0 : vector<256x1xi32> to vector<256x128xi32>
    %3 = arith.cmpi eq, %2, %1 : vector<256x128xi32>
    %4 = arith.extui %3 : vector<256x128xi1> to vector<256x128xi32>
    %5 = arith.sitofp %4 : vector<256x128xi32> to vector<256x128xf32>
    %c0_1 = arith.constant 0 : index
    %c0_2 = arith.constant 0 : index
    %6 = vector.load %arg2[%c0_1, %c0_2] : memref<128x128xf32, #tpu.memory_space<vmem>>, vector<128x128xf32>
    %cst = arith.constant dense<0.000000e+00> : vector<256x128xf32>
    %7 = tpu.matmul %5, %6, %cst {dimension_numbers = #tpu.dot_dimension_numbers<[1], [0], [0], [1], [0, 0, 1, 1], [], []>} : vector<256x128xf32>, vector<128x128xf32>, vector<256x128xf32> -> vector<256x128xf32>
    %c0_3 = arith.constant 0 : index
    %c0_4 = arith.constant 0 : index
    %8 = vector.load %arg3[%c0_3, %c0_4] : memref<256x128xf32, #tpu.memory_space<vmem>>, vector<256x128xf32>
    tpu.vector_store %arg3[%c0_3, %c0_4], %7 {strides = array<i32>} : memref<256x128xf32, #tpu.memory_space<vmem>>, vector<256x128xf32>,
    return
  }
  func.func @transform_0(%arg0: i32) -> (i32, i32) {
    %c0_i32 = arith.constant 0 : i32
    %c0_i32_0 = arith.constant 0 : i32
    return %arg0, %c0_i32 : i32, i32
  }
  func.func @transform_1(%arg0: i32) -> (i32, i32) {
    %c0_i32 = arith.constant 0 : i32
    %c0_i32_0 = arith.constant 0 : i32
    %c0_i32_1 = arith.constant 0 : i32
    return %c0_i32, %c0_i32_0 : i32, i32
  }
  func.func @transform_2(%arg0: i32) -> (i32, i32) {
    %c0_i32 = arith.constant 0 : i32
    %c0_i32_0 = arith.constant 0 : i32
    return %arg0, %c0_i32 : i32, i32
  }
}

</mosaic_0001>

<llo_original>
// kernel: tpu_custom_call.1
$region0: #{tpu_custom_call.1}
  #allocation0 [shape = 'u32[]', space=smem, size = 0x4, offset = 0x4, fixed_abs, tag = 'smem constant byte address 0x4 - core index']
  #allocation1 [shape = 'u32[144,128]{1,0:T(1,128)}', space=vmem, size = 0x12000, scoped, tag = 'internal scratch']
  %s0 = inlined_call_operand.vmem [shape: s32[256,1], index: 0, kind: input, shape index: {}]
  %s1 = inlined_call_operand.vmem [shape: f32[128,128], index: 1, kind: input, shape index: {}]
  %s2 = inlined_call_operand.hbm [shape: f32[256,128], index: 2, kind: output, shape index: {}]
  %s3 = sld [smem:[#allocation0]]
  $region18: #{tpu_custom_call.1} parent=0
    _
  %s5 = ssub.s32 1, %s3
  %s6 = scalar_select 0, %s5, %s3
  $region1: #{tpu_custom_call.1} parent=0
    #allocation2 [shape = 'u8[131072]{0}', space=vmem, size = 0x20000, scoped, tag = 'output window, operand 0, single buffered']
    #allocation3 [shape = 's32[1]{0}', space=sflag, size = 0x4, scoped, tag = 'scoped memory for tpu_custom_call.1']
    %7 = vsyncpa [#allocation3], 0
    // Predicated region
    $region2: #{tpu_custom_call.1} parent=1 // pred_check
      _
    $region3: #{tpu_custom_call.1} parent=1 // pred_check_branch
      %9 = sbr.rel (0) target = $region5
    $region4: #{tpu_custom_call.1} parent=1 // pred_region
      _
    $region5: #{tpu_custom_call.1} parent=1 // pred_fallthru
      _
    // Predicated region
    $region6: #{tpu_custom_call.1} parent=1 // pred_check
      _
    $region7: #{tpu_custom_call.1} parent=1 // pred_check_branch
      %11 = sbr.rel (0) target = $region9
    $region8: #{tpu_custom_call.1} parent=1 // pred_region
      _
    $region9: #{tpu_custom_call.1} parent=1 // pred_fallthru
      _
    %v12 = vld [vmem:[%s0] sm:$0xff]
    %v13 = vld [vmem:[%s0 + $0x8] sm:$0xff]
    %v14 = vld [vmem:[%s0 + $0x10] sm:$0xff]
    %v15 = vld [vmem:[%s0 + $0x18] sm:$0xff]
    %v16 = vld [vmem:[%s0 + $0x20] sm:$0xff]
    %v17 = vld [vmem:[%s0 + $0x28] sm:$0xff]
    %v18 = vld [vmem:[%s0 + $0x30] sm:$0xff]
    %v19 = vld [vmem:[%s0 + $0x38] sm:$0xff]
    %v20 = vld [vmem:[%s0 + $0x40] sm:$0xff]
    %v21 = vld [vmem:[%s0 + $0x48] sm:$0xff]
    %v22 = vld [vmem:[%s0 + $0x50] sm:$0xff]
    %v23 = vld [vmem:[%s0 + $0x58] sm:$0xff]
    %v24 = vld [vmem:[%s0 + $0x60] sm:$0xff]
    %v25 = vld [vmem:[%s0 + $0x68] sm:$0xff]
    %v26 = vld [vmem:[%s0 + $0x70] sm:$0xff]
    %v27 = vld [vmem:[%s0 + $0x78] sm:$0xff]
    %v28 = vld [vmem:[%s0 + $0x80] sm:$0xff]
    %v29 = vld [vmem:[%s0 + $0x88] sm:$0xff]
    %v30 = vld [vmem:[%s0 + $0x90] sm:$0xff]
    %v31 = vld [vmem:[%s0 + $0x98] sm:$0xff]
    %v32 = vld [vmem:[%s0 + $0xa0] sm:$0xff]
    %v33 = vld [vmem:[%s0 + $0xa8] sm:$0xff]
    %v34 = vld [vmem:[%s0 + $0xb0] sm:$0xff]
    %v35 = vld [vmem:[%s0 + $0xb8] sm:$0xff]
    %v36 = vld [vmem:[%s0 + $0xc0] sm:$0xff]
    %v37 = vld [vmem:[%s0 + $0xc8] sm:$0xff]
    %v38 = vld [vmem:[%s0 + $0xd0] sm:$0xff]
    %v39 = vld [vmem:[%s0 + $0xd8] sm:$0xff]
    %v40 = vld [vmem:[%s0 + $0xe0] sm:$0xff]
    %v41 = vld [vmem:[%s0 + $0xe8] sm:$0xff]
    %v42 = vld [vmem:[%s0 + $0xf0] sm:$0xff]
    %v43 = vld [vmem:[%s0 + $0xf8] sm:$0xff]
    %v44 = vlaneseq
    %v45 = vand.u32 %v44, 127
    %46 = vset.pattern.permute.xlu0 0
    %47 = vperm.xlu0 %46, %v12
    %v48 = vpop.permute.xlu0 %47
    %49 = vset.pattern.permute.xlu0 0
    %50 = vperm.xlu0 %49, %v13
    %v51 = vpop.permute.xlu0 %50
    %52 = vset.pattern.permute.xlu0 0
    %53 = vperm.xlu0 %52, %v14
    %v54 = vpop.permute.xlu0 %53
    %55 = vset.pattern.permute.xlu0 0
    %56 = vperm.xlu0 %55, %v15
    %v57 = vpop.permute.xlu0 %56
    %58 = vset.pattern.permute.xlu0 0
    %59 = vperm.xlu0 %58, %v16
    %v60 = vpop.permute.xlu0 %59
    %61 = vset.pattern.permute.xlu0 0
    %62 = vperm.xlu0 %61, %v17
    %v63 = vpop.permute.xlu0 %62
    %64 = vset.pattern.permute.xlu0 0
    %65 = vperm.xlu0 %64, %v18
    %v66 = vpop.permute.xlu0 %65
    %67 = vset.pattern.permute.xlu0 0
    %68 = vperm.xlu0 %67, %v19
    %v69 = vpop.permute.xlu0 %68
    %70 = vset.pattern.permute.xlu0 0
    %71 = vperm.xlu0 %70, %v20
    %v72 = vpop.permute.xlu0 %71
    %73 = vset.pattern.permute.xlu0 0
    %74 = vperm.xlu0 %73, %v21
    %v75 = vpop.permute.xlu0 %74
    %76 = vset.pattern.permute.xlu0 0
    %77 = vperm.xlu0 %76, %v22
    %v78 = vpop.permute.xlu0 %77
    %79 = vset.pattern.permute.xlu0 0
    %80 = vperm.xlu0 %79, %v23
    %v81 = vpop.permute.xlu0 %80
    %82 = vset.pattern.permute.xlu0 0
    %83 = vperm.xlu0 %82, %v24
    %v84 = vpop.permute.xlu0 %83
    %85 = vset.pattern.permute.xlu0 0
    %86 = vperm.xlu0 %85, %v25
    %v87 = vpop.permute.xlu0 %86
    %88 = vset.pattern.permute.xlu0 0
    %89 = vperm.xlu0 %88, %v26
    %v90 = vpop.permute.xlu0 %89
    %91 = vset.pattern.permute.xlu0 0
    %92 = vperm.xlu0 %91, %v27
    %v93 = vpop.permute.xlu0 %92
    %94 = vset.pattern.permute.xlu0 0
    %95 = vperm.xlu0 %94, %v28
    %v96 = vpop.permute.xlu0 %95
    %97 = vset.pattern.permute.xlu0 0
    %98 = vperm.xlu0 %97, %v29
    %v99 = vpop.permute.xlu0 %98
    %100 = vset.pattern.permute.xlu0 0
    %101 = vperm.xlu0 %100, %v30
    %v102 = vpop.permute.xlu0 %101
    %103 = vset.pattern.permute.xlu0 0
    %104 = vperm.xlu0 %103, %v31
    %v105 = vpop.permute.xlu0 %104
    %106 = vset.pattern.permute.xlu0 0
    %107 = vperm.xlu0 %106, %v32
    %v108 = vpop.permute.xlu0 %107
    %109 = vset.pattern.permute.xlu0 0
    %110 = vperm.xlu0 %109, %v33
    %v111 = vpop.permute.xlu0 %110
    %112 = vset.pattern.permute.xlu0 0
    %113 = vperm.xlu0 %112, %v34
    %v114 = vpop.permute.xlu0 %113
    %115 = vset.pattern.permute.xlu0 0
    %116 = vperm.xlu0 %115, %v35
    %v117 = vpop.permute.xlu0 %116
    %118 = vset.pattern.permute.xlu0 0
    %119 = vperm.xlu0 %118, %v36
    %v120 = vpop.permute.xlu0 %119
    %121 = vset.pattern.permute.xlu0 0
    %122 = vperm.xlu0 %121, %v37
    %v123 = vpop.permute.xlu0 %122
    %124 = vset.pattern.permute.xlu0 0
    %125 = vperm.xlu0 %124, %v38
    %v126 = vpop.permute.xlu0 %125
    %127 = vset.pattern.permute.xlu0 0
    %128 = vperm.xlu0 %127, %v39
    %v129 = vpop.permute.xlu0 %128
    %130 = vset.pattern.permute.xlu0 0
    %131 = vperm.xlu0 %130, %v40
    %v132 = vpop.permute.xlu0 %131
    %133 = vset.pattern.permute.xlu0 0
    %134 = vperm.xlu0 %133, %v41
    %v135 = vpop.permute.xlu0 %134
    %136 = vset.pattern.permute.xlu0 0
    %137 = vperm.xlu0 %136, %v42
    %v138 = vpop.permute.xlu0 %137
    %139 = vset.pattern.permute.xlu0 0
    %140 = vperm.xlu0 %139, %v43
    %v141 = vpop.permute.xlu0 %140
    %vm142 = vcmp.eq.s32.totalorder %v48, %v45
    %vm143 = vcmp.eq.s32.totalorder %v51, %v45
    %vm144 = vcmp.eq.s32.totalorder %v54, %v45
    %vm145 = vcmp.eq.s32.totalorder %v57, %v45
    %vm146 = vcmp.eq.s32.totalorder %v60, %v45
    %vm147 = vcmp.eq.s32.totalorder %v63, %v45
    %vm148 = vcmp.eq.s32.totalorder %v66, %v45
    %vm149 = vcmp.eq.s32.totalorder %v69, %v45
    %vm150 = vcmp.eq.s32.totalorder %v72, %v45
    %vm151 = vcmp.eq.s32.totalorder %v75, %v45
    %vm152 = vcmp.eq.s32.totalorder %v78, %v45
    %vm153 = vcmp.eq.s32.totalorder %v81, %v45
    %vm154 = vcmp.eq.s32.totalorder %v84, %v45
    %vm155 = vcmp.eq.s32.totalorder %v87, %v45
    %vm156 = vcmp.eq.s32.totalorder %v90, %v45
    %vm157 = vcmp.eq.s32.totalorder %v93, %v45
    %vm158 = vcmp.eq.s32.totalorder %v96, %v45
    %vm159 = vcmp.eq.s32.totalorder %v99, %v45
    %vm160 = vcmp.eq.s32.totalorder %v102, %v45
    %vm161 = vcmp.eq.s32.totalorder %v105, %v45
    %vm162 = vcmp.eq.s32.totalorder %v108, %v45
    %vm163 = vcmp.eq.s32.totalorder %v111, %v45
    %vm164 = vcmp.eq.s32.totalorder %v114, %v45
    %vm165 = vcmp.eq.s32.totalorder %v117, %v45
    %vm166 = vcmp.eq.s32.totalorder %v120, %v45
    %vm167 = vcmp.eq.s32.totalorder %v123, %v45
    %vm168 = vcmp.eq.s32.totalorder %v126, %v45
    %vm169 = vcmp.eq.s32.totalorder %v129, %v45
    %vm170 = vcmp.eq.s32.totalorder %v132, %v45
    %vm171 = vcmp.eq.s32.totalorder %v135, %v45
    %vm172 = vcmp.eq.s32.totalorder %v138, %v45
    %vm173 = vcmp.eq.s32.totalorder %v141, %v45
    %v174 = vsel %vm142, 1, 0
    %v175 = vsel %vm143, 1, 0
    %v176 = vsel %vm144, 1, 0
    %v177 = vsel %vm145, 1, 0
    %v178 = vsel %vm146, 1, 0
    %v179 = vsel %vm147, 1, 0
    %v180 = vsel %vm148, 1, 0
    %v181 = vsel %vm149, 1, 0
    %v182 = vsel %vm150, 1, 0
    %v183 = vsel %vm151, 1, 0
    %v184 = vsel %vm152, 1, 0
    %v185 = vsel %vm153, 1, 0
    %v186 = vsel %vm154, 1, 0
    %v187 = vsel %vm155, 1, 0
    %v188 = vsel %vm156, 1, 0
    %v189 = vsel %vm157, 1, 0
    %v190 = vsel %vm158, 1, 0
    %v191 = vsel %vm159, 1, 0
    %v192 = vsel %vm160, 1, 0
    %v193 = vsel %vm161, 1, 0
    %v194 = vsel %vm162, 1, 0
    %v195 = vsel %vm163, 1, 0
    %v196 = vsel %vm164, 1, 0
    %v197 = vsel %vm165, 1, 0
    %v198 = vsel %vm166, 1, 0
    %v199 = vsel %vm167, 1, 0
    %v200 = vsel %vm168, 1, 0
    %v201 = vsel %vm169, 1, 0
    %v202 = vsel %vm170, 1, 0
    %v203 = vsel %vm171, 1, 0
    %v204 = vsel %vm172, 1, 0
    %v205 = vsel %vm173, 1, 0
    %v206 = vcvt.s32.f32 %v174
    %v207 = vcvt.s32.f32 %v175
    %v208 = vcvt.s32.f32 %v176
    %v209 = vcvt.s32.f32 %v177
    %v210 = vcvt.s32.f32 %v178
    %v211 = vcvt.s32.f32 %v179
    %v212 = vcvt.s32.f32 %v180
    %v213 = vcvt.s32.f32 %v181
    %v214 = vcvt.s32.f32 %v182
    %v215 = vcvt.s32.f32 %v183
    %v216 = vcvt.s32.f32 %v184
    %v217 = vcvt.s32.f32 %v185
    %v218 = vcvt.s32.f32 %v186
    %v219 = vcvt.s32.f32 %v187
    %v220 = vcvt.s32.f32 %v188
    %v221 = vcvt.s32.f32 %v189
    %v222 = vcvt.s32.f32 %v190
    %v223 = vcvt.s32.f32 %v191
    %v224 = vcvt.s32.f32 %v192
    %v225 = vcvt.s32.f32 %v193
    %v226 = vcvt.s32.f32 %v194
    %v227 = vcvt.s32.f32 %v195
    %v228 = vcvt.s32.f32 %v196
    %v229 = vcvt.s32.f32 %v197
    %v230 = vcvt.s32.f32 %v198
    %v231 = vcvt.s32.f32 %v199
    %v232 = vcvt.s32.f32 %v200
    %v233 = vcvt.s32.f32 %v201
    %v234 = vcvt.s32.f32 %v202
    %v235 = vcvt.s32.f32 %v203
    %v236 = vcvt.s32.f32 %v204
    %v237 = vcvt.s32.f32 %v205
    %v238 = vld [vmem:[%s1] sm:$0xff]
    %v239 = vld [vmem:[%s1 + $0x8] sm:$0xff]
    %v240 = vld [vmem:[%s1 + $0x10] sm:$0xff]
    %v241 = vld [vmem:[%s1 + $0x18] sm:$0xff]
    %v242 = vld [vmem:[%s1 + $0x20] sm:$0xff]
    %v243 = vld [vmem:[%s1 + $0x28] sm:$0xff]
    %v244 = vld [vmem:[%s1 + $0x30] sm:$0xff]
    %v245 = vld [vmem:[%s1 + $0x38] sm:$0xff]
    %v246 = vld [vmem:[%s1 + $0x40] sm:$0xff]
    %v247 = vld [vmem:[%s1 + $0x48] sm:$0xff]
    %v248 = vld [vmem:[%s1 + $0x50] sm:$0xff]
    %v249 = vld [vmem:[%s1 + $0x58] sm:$0xff]
    %v250 = vld [vmem:[%s1 + $0x60] sm:$0xff]
    %v251 = vld [vmem:[%s1 + $0x68] sm:$0xff]
    %v252 = vld [vmem:[%s1 + $0x70] sm:$0xff]
    %v253 = vld [vmem:[%s1 + $0x78] sm:$0xff]
    %254 = vmatprep.subr.mxu0 0.0
    %255 = vmatpush1.msra.mxu0 %v238
    %256 = vmatprep.subr.mxu0 0.0
    %257 = vmatpush1.msra.mxu0 %v239
    %258 = vmatprep.subr.mxu0 0.0
    %259 = vmatpush1.msra.mxu0 %v240
    %260 = vmatprep.subr.mxu0 0.0
    %261 = vmatpush1.msra.mxu0 %v241
    %262 = vmatprep.subr.mxu0 0.0
    %263 = vmatpush1.msra.mxu0 %v242
    %264 = vmatprep.subr.mxu0 0.0
    %265 = vmatpush1.msra.mxu0 %v243
    %266 = vmatprep.subr.mxu0 0.0
    %267 = vmatpush1.msra.mxu0 %v244
    %268 = vmatprep.subr.mxu0 0.0
    %269 = vmatpush1.msra.mxu0 %v245
    %270 = vmatprep.subr.mxu0 0.0
    %271 = vmatpush1.msra.mxu0 %v246
    %272 = vmatprep.subr.mxu0 0.0
    %273 = vmatpush1.msra.mxu0 %v247
    %274 = vmatprep.subr.mxu0 0.0
    %275 = vmatpush1.msra.mxu0 %v248
    %276 = vmatprep.subr.mxu0 0.0
    %277 = vmatpush1.msra.mxu0 %v249
    %278 = vmatprep.subr.mxu0 0.0
    %279 = vmatpush1.msra.mxu0 %v250
    %280 = vmatprep.subr.mxu0 0.0
    %281 = vmatpush1.msra.mxu0 %v251
    %282 = vmatprep.subr.mxu0 0.0
    %283 = vmatpush1.msra.mxu0 %v252
    %284 = vmatprep.subr.mxu0 0.0
    %285 = vmatpush1.msra.mxu0 %v253
    %286 = vmatprep.subr.mxu0 0.0
    %287 = vmatpush1.msra.mxu0 0.0
    %288 = vmatprep.subr.mxu0 0.0
    %289 = vmatpush1.msra.mxu0 0.0
    %290 = vmatprep.subr.mxu0 0.0
    %291 = vmatpush1.msra.mxu0 0.0
    %292 = vmatprep.subr.mxu0 0.0
    %293 = vmatpush1.msra.mxu0 0.0
    %294 = vmatprep.subr.mxu0 0.0
    %295 = vmatpush1.msra.mxu0 0.0
    %296 = vmatprep.subr.mxu0 0.0
    %297 = vmatpush1.msra.mxu0 0.0
    %298 = vmatprep.subr.mxu0 0.0
    %299 = vmatpush1.msra.mxu0 0.0
    %300 = vmatprep.subr.mxu0 0.0
    %301 = vmatpush1.msra.mxu0 0.0
    %302 = vmatprep.subr.mxu0 0.0
    %303 = vmatpush1.msra.mxu0 0.0
    %304 = vmatprep.subr.mxu0 0.0
    %305 = vmatpush1.msra.mxu0 0.0
    %306 = vmatprep.subr.mxu0 0.0
    %307 = vmatpush1.msra.mxu0 0.0
    %308 = vmatprep.subr.mxu0 0.0
    %309 = vmatpush1.msra.mxu0 0.0
    %310 = vmatprep.subr.mxu0 0.0
    %311 = vmatpush1.msra.mxu0 0.0
    %312 = vmatprep.subr.mxu0 0.0
    %313 = vmatpush1.msra.mxu0 0.0
    %314 = vmatprep.subr.mxu0 0.0
    %315 = vmatpush1.msra.mxu0 0.0
    %316 = vmatprep.subr.mxu0 0.0
    %317 = vmatpush1.msra.mxu0 0.0
    %318 = vmatprep.mubr.f32.mxu0 0.0
    %319 = vmatmul.mubr.f32.gmra.mrb[0].mxu0 %v206
    %v320 = vpop.f32.mrb[0].mxu0
    %v321 = vadd.f32 0.0, %v320
    %v322 = vpop.f32.mrb[0].mxu0
    %323 = vmatprep.mubr.f32.mxu0 0.0
    %324 = vmatmul.mubr.f32.gmra.mrb[0].mxu0 %v207
    %v325 = vpop.f32.mrb[0].mxu0
    %v326 = vadd.f32 0.0, %v325
    %v327 = vpop.f32.mrb[0].mxu0
    %328 = vmatprep.mubr.f32.mxu0 0.0
    %329 = vmatmul.mubr.f32.gmra.mrb[0].mxu0 %v208
    %v330 = vpop.f32.mrb[0].mxu0
    %v331 = vadd.f32 0.0, %v330
    %v332 = vpop.f32.mrb[0].mxu0
    %333 = vmatprep.mubr.f32.mxu0 0.0
    %334 = vmatmul.mubr.f32.gmra.mrb[0].mxu0 %v209
    %v335 = vpop.f32.mrb[0].mxu0
    %v336 = vadd.f32 0.0, %v335
    %v337 = vpop.f32.mrb[0].mxu0
    %338 = vmatprep.mubr.f32.mxu0 0.0
    %339 = vmatmul.mubr.f32.gmra.mrb[0].mxu0 %v210
    %v340 = vpop.f32.mrb[0].mxu0
    %v341 = vadd.f32 0.0, %v340
    %v342 = vpop.f32.mrb[0].mxu0
    %343 = vmatprep.mubr.f32.mxu0 0.0
    %344 = vmatmul.mubr.f32.gmra.mrb[0].mxu0 %v211
    %v345 = vpop.f32.mrb[0].mxu0
    %v346 = vadd.f32 0.0, %v345
    %v347 = vpop.f32.mrb[0].mxu0
    %348 = vmatprep.mubr.f32.mxu0 0.0
    %349 = vmatmul.mubr.f32.gmra.mrb[0].mxu0 %v212
    %v350 = vpop.f32.mrb[0].mxu0
    %v351 = vadd.f32 0.0, %v350
    %v352 = vpop.f32.mrb[0].mxu0
    %353 = vmatprep.mubr.f32.mxu0 0.0
    %354 = vmatmul.mubr.f32.gmra.mrb[0].mxu0 %v213
    %v355 = vpop.f32.mrb[0].mxu0
    %v356 = vadd.f32 0.0, %v355
    %v357 = vpop.f32.mrb[0].mxu0
    %358 = vmatprep.mubr.f32.mxu0 0.0
    %359 = vmatmul.mubr.f32.gmra.mrb[0].mxu0 %v214
    %v360 = vpop.f32.mrb[0].mxu0
    %v361 = vadd.f32 0.0, %v360
    %v362 = vpop.f32.mrb[0].mxu0
    %363 = vmatprep.mubr.f32.mxu0 0.0
    %364 = vmatmul.mubr.f32.gmra.mrb[0].mxu0 %v215
    %v365 = vpop.f32.mrb[0].mxu0
    %v366 = vadd.f32 0.0, %v365
    %v367 = vpop.f32.mrb[0].mxu0
    %368 = vmatprep.mubr.f32.mxu0 0.0
    %369 = vmatmul.mubr.f32.gmra.mrb[0].mxu0 %v216
    %v370 = vpop.f32.mrb[0].mxu0
    %v371 = vadd.f32 0.0, %v370
    %v372 = vpop.f32.mrb[0].mxu0
    %373 = vmatprep.mubr.f32.mxu0 0.0
    %374 = vmatmul.mubr.f32.gmra.mrb[0].mxu0 %v217
    %v375 = vpop.f32.mrb[0].mxu0
    %v376 = vadd.f32 0.0, %v375
    %v377 = vpop.f32.mrb[0].mxu0
    %378 = vmatprep.mubr.f32.mxu0 0.0
    %379 = vmatmul.mubr.f32.gmra.mrb[0].mxu0 %v218
    %v380 = vpop.f32.mrb[0].mxu0
    %v381 = vadd.f32 0.0, %v380
    %v382 = vpop.f32.mrb[0].mxu0
    %383 = vmatprep.mubr.f32.mxu0 0.0
    %384 = vmatmul.mubr.f32.gmra.mrb[0].mxu0 %v219
    %v385 = vpop.f32.mrb[0].mxu0
    %v386 = vadd.f32 0.0, %v385
    %v387 = vpop.f32.mrb[0].mxu0
    %388 = vmatprep.mubr.f32.mxu0 0.0
    %389 = vmatmul.mubr.f32.gmra.mrb[0].mxu0 %v220
    %v390 = vpop.f32.mrb[0].mxu0
    %v391 = vadd.f32 0.0, %v390
    %v392 = vpop.f32.mrb[0].mxu0
    %393 = vmatprep.mubr.f32.mxu0 0.0
    %394 = vmatmul.mubr.f32.gmra.mrb[0].mxu0 %v221
    %v395 = vpop.f32.mrb[0].mxu0
    %v396 = vadd.f32 0.0, %v395
    %v397 = vpop.f32.mrb[0].mxu0
    %398 = vmatprep.mubr.f32.mxu0 0.0
    %399 = vmatmul.mubr.f32.gmra.mrb[0].mxu0 %v222
    %v400 = vpop.f32.mrb[0].mxu0
    %v401 = vadd.f32 0.0, %v400
    %v402 = vpop.f32.mrb[0].mxu0
    %403 = vmatprep.mubr.f32.mxu0 0.0
    %404 = vmatmul.mubr.f32.gmra.mrb[0].mxu0 %v223
    %v405 = vpop.f32.mrb[0].mxu0
    %v406 = vadd.f32 0.0, %v405
    %v407 = vpop.f32.mrb[0].mxu0
    %408 = vmatprep.mubr.f32.mxu0 0.0
    %409 = vmatmul.mubr.f32.gmra.mrb[0].mxu0 %v224
    %v410 = vpop.f32.mrb[0].mxu0
    %v411 = vadd.f32 0.0, %v410
    %v412 = vpop.f32.mrb[0].mxu0
    %413 = vmatprep.mubr.f32.mxu0 0.0
    %414 = vmatmul.mubr.f32.gmra.mrb[0].mxu0 %v225
    %v415 = vpop.f32.mrb[0].mxu0
    %v416 = vadd.f32 0.0, %v415
    %v417 = vpop.f32.mrb[0].mxu0
    %418 = vmatprep.mubr.f32.mxu0 0.0
    %419 = vmatmul.mubr.f32.gmra.mrb[0].mxu0 %v226
    %v420 = vpop.f32.mrb[0].mxu0
    %v421 = vadd.f32 0.0, %v420
    %v422 = vpop.f32.mrb[0].mxu0
    %423 = vmatprep.mubr.f32.mxu0 0.0
    %424 = vmatmul.mubr.f32.gmra.mrb[0].mxu0 %v227
    %v425 = vpop.f32.mrb[0].mxu0
    %v426 = vadd.f32 0.0, %v425
    %v427 = vpop.f32.mrb[0].mxu0
    %428 = vmatprep.mubr.f32.mxu0 0.0
    %429 = vmatmul.mubr.f32.gmra.mrb[0].mxu0 %v228
    %v430 = vpop.f32.mrb[0].mxu0
    %v431 = vadd.f32 0.0, %v430
    %v432 = vpop.f32.mrb[0].mxu0
    %433 = vmatprep.mubr.f32.mxu0 0.0
    %434 = vmatmul.mubr.f32.gmra.mrb[0].mxu0 %v229
    %v435 = vpop.f32.mrb[0].mxu0
    %v436 = vadd.f32 0.0, %v435
    %v437 = vpop.f32.mrb[0].mxu0
    %438 = vmatprep.mubr.f32.mxu0 0.0
    %439 = vmatmul.mubr.f32.gmra.mrb[0].mxu0 %v230
    %v440 = vpop.f32.mrb[0].mxu0
    %v441 = vadd.f32 0.0, %v440
    %v442 = vpop.f32.mrb[0].mxu0
    %443 = vmatprep.mubr.f32.mxu0 0.0
    %444 = vmatmul.mubr.f32.gmra.mrb[0].mxu0 %v231
    %v445 = vpop.f32.mrb[0].mxu0
    %v446 = vadd.f32 0.0, %v445
    %v447 = vpop.f32.mrb[0].mxu0
    %448 = vmatprep.mubr.f32.mxu0 0.0
    %449 = vmatmul.mubr.f32.gmra.mrb[0].mxu0 %v232
    %v450 = vpop.f32.mrb[0].mxu0
    %v451 = vadd.f32 0.0, %v450
    %v452 = vpop.f32.mrb[0].mxu0
    %453 = vmatprep.mubr.f32.mxu0 0.0
    %454 = vmatmul.mubr.f32.gmra.mrb[0].mxu0 %v233
    %v455 = vpop.f32.mrb[0].mxu0
    %v456 = vadd.f32 0.0, %v455
    %v457 = vpop.f32.mrb[0].mxu0
    %458 = vmatprep.mubr.f32.mxu0 0.0
    %459 = vmatmul.mubr.f32.gmra.mrb[0].mxu0 %v234
    %v460 = vpop.f32.mrb[0].mxu0
    %v461 = vadd.f32 0.0, %v460
    %v462 = vpop.f32.mrb[0].mxu0
    %463 = vmatprep.mubr.f32.mxu0 0.0
    %464 = vmatmul.mubr.f32.gmra.mrb[0].mxu0 %v235
    %v465 = vpop.f32.mrb[0].mxu0
    %v466 = vadd.f32 0.0, %v465
    %v467 = vpop.f32.mrb[0].mxu0
    %468 = vmatprep.mubr.f32.mxu0 0.0
    %469 = vmatmul.mubr.f32.gmra.mrb[0].mxu0 %v236
    %v470 = vpop.f32.mrb[0].mxu0
    %v471 = vadd.f32 0.0, %v470
    %v472 = vpop.f32.mrb[0].mxu0
    %473 = vmatprep.mubr.f32.mxu0 0.0
    %474 = vmatmul.mubr.f32.gmra.mrb[0].mxu0 %v237
    %v475 = vpop.f32.mrb[0].mxu0
    %v476 = vadd.f32 0.0, %v475
    %v477 = vpop.f32.mrb[0].mxu0
    %478 = vdwg.mxu0
    %479 = vst [vmem:[#allocation2] sm:$0xff] %v321
    %480 = vst [vmem:[#allocation2 + $0x8] sm:$0xff] %v326
    %481 = vst [vmem:[#allocation2 + $0x10] sm:$0xff] %v331
    %482 = vst [vmem:[#allocation2 + $0x18] sm:$0xff] %v336
    %483 = vst [vmem:[#allocation2 + $0x20] sm:$0xff] %v341
    %484 = vst [vmem:[#allocation2 + $0x28] sm:$0xff] %v346
    %485 = vst [vmem:[#allocation2 + $0x30] sm:$0xff] %v351
    %486 = vst [vmem:[#allocation2 + $0x38] sm:$0xff] %v356
    %487 = vst [vmem:[#allocation2 + $0x40] sm:$0xff] %v361
    %488 = vst [vmem:[#allocation2 + $0x48] sm:$0xff] %v366
    %489 = vst [vmem:[#allocation2 + $0x50] sm:$0xff] %v371
    %490 = vst [vmem:[#allocation2 + $0x58] sm:$0xff] %v376
    %491 = vst [vmem:[#allocation2 + $0x60] sm:$0xff] %v381
    %492 = vst [vmem:[#allocation2 + $0x68] sm:$0xff] %v386
    %493 = vst [vmem:[#allocation2 + $0x70] sm:$0xff] %v391
    %494 = vst [vmem:[#allocation2 + $0x78] sm:$0xff] %v396
    %495 = vst [vmem:[#allocation2 + $0x80] sm:$0xff] %v401
    %496 = vst [vmem:[#allocation2 + $0x88] sm:$0xff] %v406
    %497 = vst [vmem:[#allocation2 + $0x90] sm:$0xff] %v411
    %498 = vst [vmem:[#allocation2 + $0x98] sm:$0xff] %v416
    %499 = vst [vmem:[#allocation2 + $0xa0] sm:$0xff] %v421
    %500 = vst [vmem:[#allocation2 + $0xa8] sm:$0xff] %v426
    %501 = vst [vmem:[#allocation2 + $0xb0] sm:$0xff] %v431
    %502 = vst [vmem:[#allocation2 + $0xb8] sm:$0xff] %v436
    %503 = vst [vmem:[#allocation2 + $0xc0] sm:$0xff] %v441
    %504 = vst [vmem:[#allocation2 + $0xc8] sm:$0xff] %v446
    %505 = vst [vmem:[#allocation2 + $0xd0] sm:$0xff] %v451
    %506 = vst [vmem:[#allocation2 + $0xd8] sm:$0xff] %v456
    %507 = vst [vmem:[#allocation2 + $0xe0] sm:$0xff] %v461
    %508 = vst [vmem:[#allocation2 + $0xe8] sm:$0xff] %v466
    %509 = vst [vmem:[#allocation2 + $0xf0] sm:$0xff] %v471
    %510 = vst [vmem:[#allocation2 + $0xf8] sm:$0xff] %v476
    // Predicated region
    $region10: #{tpu_custom_call.1} parent=1 // pred_check
      _
    $region11: #{tpu_custom_call.1} parent=1 // pred_check_branch
      %512 = sbr.rel (0) target = $region13
    $region12: #{tpu_custom_call.1} parent=1 // pred_region
      %s514 = ssub.s32 4096, 4096
      %515 = vsyncadd [#allocation3], %s514
      %s516 = sshll.u32 [#allocation2], 4
      %s517 = int_to_ptr.vmem [resolvable:$true] %s516
      %522 = dma.vmem_to_hbm [thread:$0]  %s517, 4096, %s2, [#allocation3], 128, 128, 8
    $region13: #{tpu_custom_call.1} parent=1 // pred_fallthru
      _
    // Predicated region
    $region14: #{tpu_custom_call.1} parent=1 // pred_check
      _
    $region15: #{tpu_custom_call.1} parent=1 // pred_check_branch
      %524 = sbr.rel (0) target = $region17
    $region16: #{tpu_custom_call.1} parent=1 // pred_region
      %525 = dma.done [#allocation3], 4096
    $region17: #{tpu_custom_call.1} parent=1 // pred_fallthru
      _
    %526 = vsyncpa [#allocation3], 1

// kernel: tpu_custom_call.1
$region0: #{tpu_custom_call.1}
  #allocation0 [shape = 'u32[]', space=smem, size = 0x4, offset = 0x4, fixed_abs, tag = 'smem constant byte address 0x4 - core index']
  #allocation1 [shape = 'u32[144,128]{1,0:T(1,128)}', space=vmem, size = 0x12000, scoped, tag = 'internal scratch']
  %s0 = inlined_call_operand.vmem [shape: s32[256,1], index: 0, kind: input, shape index: {}]
  %s1 = inlined_call_operand.vmem [shape: f32[128,128], index: 1, kind: input, shape index: {}]
  %s2 = inlined_call_operand.hbm [shape: f32[256,128], index: 2, kind: output, shape index: {}]
  %s3 = sld [smem:[#allocation0]]
  $region18: #{tpu_custom_call.1} parent=0
    _
  %s5 = ssub.s32 1, %s3
  %s6 = scalar_select 0, %s5, %s3
  $region1: #{tpu_custom_call.1} parent=0
    #allocation2 [shape = 'u8[131072]{0}', space=vmem, size = 0x20000, scoped, tag = 'output window, operand 0, single buffered']
    #allocation3 [shape = 's32[1]{0}', space=sflag, size = 0x4, scoped, tag = 'scoped memory for tpu_custom_call.1']
    %7 = vsyncpa [#allocation3], 0
    // Predicated region
    $region2: #{tpu_custom_call.1} parent=1 // pred_check
      _
    $region3: #{tpu_custom_call.1} parent=1 // pred_check_branch
      %9 = sbr.rel (0) target = $region5
    $region4: #{tpu_custom_call.1} parent=1 // pred_region
      _
    $region5: #{tpu_custom_call.1} parent=1 // pred_fallthru
      _
    // Predicated region
    $region6: #{tpu_custom_call.1} parent=1 // pred_check
      _
    $region7: #{tpu_custom_call.1} parent=1 // pred_check_branch
      %11 = sbr.rel (0) target = $region9
    $region8: #{tpu_custom_call.1} parent=1 // pred_region
      _
    $region9: #{tpu_custom_call.1} parent=1 // pred_fallthru
      _
    %v12 = vld [vmem:[%s0] sm:$0xff]
    %v13 = vld [vmem:[%s0 + $0x8] sm:$0xff]
    %v14 = vld [vmem:[%s0 + $0x10] sm:$0xff]
    %v15 = vld [vmem:[%s0 + $0x18] sm:$0xff]
    %v16 = vld [vmem:[%s0 + $0x20] sm:$0xff]
    %v17 = vld [vmem:[%s0 + $0x28] sm:$0xff]
    %v18 = vld [vmem:[%s0 + $0x30] sm:$0xff]
    %v19 = vld [vmem:[%s0 + $0x38] sm:$0xff]
    %v20 = vld [vmem:[%s0 + $0x40] sm:$0xff]
    %v21 = vld [vmem:[%s0 + $0x48] sm:$0xff]
    %v22 = vld [vmem:[%s0 + $0x50] sm:$0xff]
    %v23 = vld [vmem:[%s0 + $0x58] sm:$0xff]
    %v24 = vld [vmem:[%s0 + $0x60] sm:$0xff]
    %v25 = vld [vmem:[%s0 + $0x68] sm:$0xff]
    %v26 = vld [vmem:[%s0 + $0x70] sm:$0xff]
    %v27 = vld [vmem:[%s0 + $0x78] sm:$0xff]
    %v28 = vld [vmem:[%s0 + $0x80] sm:$0xff]
    %v29 = vld [vmem:[%s0 + $0x88] sm:$0xff]
    %v30 = vld [vmem:[%s0 + $0x90] sm:$0xff]
    %v31 = vld [vmem:[%s0 + $0x98] sm:$0xff]
    %v32 = vld [vmem:[%s0 + $0xa0] sm:$0xff]
    %v33 = vld [vmem:[%s0 + $0xa8] sm:$0xff]
    %v34 = vld [vmem:[%s0 + $0xb0] sm:$0xff]
    %v35 = vld [vmem:[%s0 + $0xb8] sm:$0xff]
    %v36 = vld [vmem:[%s0 + $0xc0] sm:$0xff]
    %v37 = vld [vmem:[%s0 + $0xc8] sm:$0xff]
    %v38 = vld [vmem:[%s0 + $0xd0] sm:$0xff]
    %v39 = vld [vmem:[%s0 + $0xd8] sm:$0xff]
    %v40 = vld [vmem:[%s0 + $0xe0] sm:$0xff]
    %v41 = vld [vmem:[%s0 + $0xe8] sm:$0xff]
    %v42 = vld [vmem:[%s0 + $0xf0] sm:$0xff]
    %v43 = vld [vmem:[%s0 + $0xf8] sm:$0xff]
    %v44 = vlaneseq
    %v45 = vand.u32 %v44, 127
    %46 = vset.pattern.permute.xlu0 0
    %47 = vperm.xlu0 %46, %v12
    %v48 = vpop.permute.xlu0 %47
    %49 = vset.pattern.permute.xlu0 0
    %50 = vperm.xlu0 %49, %v13
    %v51 = vpop.permute.xlu0 %50
    %52 = vset.pattern.permute.xlu0 0
    %53 = vperm.xlu0 %52, %v14
    %v54 = vpop.permute.xlu0 %53
    %55 = vset.pattern.permute.xlu0 0
    %56 = vperm.xlu0 %55, %v15
    %v57 = vpop.permute.xlu0 %56
    %58 = vset.pattern.permute.xlu0 0
    %59 = vperm.xlu0 %58, %v16
    %v60 = vpop.permute.xlu0 %59
    %61 = vset.pattern.permute.xlu0 0
    %62 = vperm.xlu0 %61, %v17
    %v63 = vpop.permute.xlu0 %62
    %64 = vset.pattern.permute.xlu0 0
    %65 = vperm.xlu0 %64, %v18
    %v66 = vpop.permute.xlu0 %65
    %67 = vset.pattern.permute.xlu0 0
    %68 = vperm.xlu0 %67, %v19
    %v69 = vpop.permute.xlu0 %68
    %70 = vset.pattern.permute.xlu0 0
    %71 = vperm.xlu0 %70, %v20
    %v72 = vpop.permute.xlu0 %71
    %73 = vset.pattern.permute.xlu0 0
    %74 = vperm.xlu0 %73, %v21
    %v75 = vpop.permute.xlu0 %74
    %76 = vset.pattern.permute.xlu0 0
    %77 = vperm.xlu0 %76, %v22
    %v78 = vpop.permute.xlu0 %77
    %79 = vset.pattern.permute.xlu0 0
    %80 = vperm.xlu0 %79, %v23
    %v81 = vpop.permute.xlu0 %80
    %82 = vset.pattern.permute.xlu0 0
    %83 = vperm.xlu0 %82, %v24
    %v84 = vpop.permute.xlu0 %83
    %85 = vset.pattern.permute.xlu0 0
    %86 = vperm.xlu0 %85, %v25
    %v87 = vpop.permute.xlu0 %86
    %88 = vset.pattern.permute.xlu0 0
    %89 = vperm.xlu0 %88, %v26
    %v90 = vpop.permute.xlu0 %89
    %91 = vset.pattern.permute.xlu0 0
    %92 = vperm.xlu0 %91, %v27
    %v93 = vpop.permute.xlu0 %92
    %94 = vset.pattern.permute.xlu0 0
    %95 = vperm.xlu0 %94, %v28
    %v96 = vpop.permute.xlu0 %95
    %97 = vset.pattern.permute.xlu0 0
    %98 = vperm.xlu0 %97, %v29
    %v99 = vpop.permute.xlu0 %98
    %100 = vset.pattern.permute.xlu0 0
    %101 = vperm.xlu0 %100, %v30
    %v102 = vpop.permute.xlu0 %101
    %103 = vset.pattern.permute.xlu0 0
    %104 = vperm.xlu0 %103, %v31
    %v105 = vpop.permute.xlu0 %104
    %106 = vset.pattern.permute.xlu0 0
    %107 = vperm.xlu0 %106, %v32
    %v108 = vpop.permute.xlu0 %107
    %109 = vset.pattern.permute.xlu0 0
    %110 = vperm.xlu0 %109, %v33
    %v111 = vpop.permute.xlu0 %110
    %112 = vset.pattern.permute.xlu0 0
    %113 = vperm.xlu0 %112, %v34
    %v114 = vpop.permute.xlu0 %113
    %115 = vset.pattern.permute.xlu0 0
    %116 = vperm.xlu0 %115, %v35
    %v117 = vpop.permute.xlu0 %116
    %118 = vset.pattern.permute.xlu0 0
    %119 = vperm.xlu0 %118, %v36
    %v120 = vpop.permute.xlu0 %119
    %121 = vset.pattern.permute.xlu0 0
    %122 = vperm.xlu0 %121, %v37
    %v123 = vpop.permute.xlu0 %122
    %124 = vset.pattern.permute.xlu0 0
    %125 = vperm.xlu0 %124, %v38
    %v126 = vpop.permute.xlu0 %125
    %127 = vset.pattern.permute.xlu0 0
    %128 = vperm.xlu0 %127, %v39
    %v129 = vpop.permute.xlu0 %128
    %130 = vset.pattern.permute.xlu0 0
    %131 = vperm.xlu0 %130, %v40
    %v132 = vpop.permute.xlu0 %131
    %133 = vset.pattern.permute.xlu0 0
    %134 = vperm.xlu0 %133, %v41
    %v135 = vpop.permute.xlu0 %134
    %136 = vset.pattern.permute.xlu0 0
    %137 = vperm.xlu0 %136, %v42
    %v138 = vpop.permute.xlu0 %137
    %139 = vset.pattern.permute.xlu0 0
    %140 = vperm.xlu0 %139, %v43
    %v141 = vpop.permute.xlu0 %140
    %vm142 = vcmp.eq.s32.totalorder %v48, %v45
    %vm143 = vcmp.eq.s32.totalorder %v51, %v45
    %vm144 = vcmp.eq.s32.totalorder %v54, %v45
    %vm145 = vcmp.eq.s32.totalorder %v57, %v45
    %vm146 = vcmp.eq.s32.totalorder %v60, %v45
    %vm147 = vcmp.eq.s32.totalorder %v63, %v45
    %vm148 = vcmp.eq.s32.totalorder %v66, %v45
    %vm149 = vcmp.eq.s32.totalorder %v69, %v45
    %vm150 = vcmp.eq.s32.totalorder %v72, %v45
    %vm151 = vcmp.eq.s32.totalorder %v75, %v45
    %vm152 = vcmp.eq.s32.totalorder %v78, %v45
    %vm153 = vcmp.eq.s32.totalorder %v81, %v45
    %vm154 = vcmp.eq.s32.totalorder %v84, %v45
    %vm155 = vcmp.eq.s32.totalorder %v87, %v45
    %vm156 = vcmp.eq.s32.totalorder %v90, %v45
    %vm157 = vcmp.eq.s32.totalorder %v93, %v45
    %vm158 = vcmp.eq.s32.totalorder %v96, %v45
    %vm159 = vcmp.eq.s32.totalorder %v99, %v45
    %vm160 = vcmp.eq.s32.totalorder %v102, %v45
    %vm161 = vcmp.eq.s32.totalorder %v105, %v45
    %vm162 = vcmp.eq.s32.totalorder %v108, %v45
    %vm163 = vcmp.eq.s32.totalorder %v111, %v45
    %vm164 = vcmp.eq.s32.totalorder %v114, %v45
    %vm165 = vcmp.eq.s32.totalorder %v117, %v45
    %vm166 = vcmp.eq.s32.totalorder %v120, %v45
    %vm167 = vcmp.eq.s32.totalorder %v123, %v45
    %vm168 = vcmp.eq.s32.totalorder %v126, %v45
    %vm169 = vcmp.eq.s32.totalorder %v129, %v45
    %vm170 = vcmp.eq.s32.totalorder %v132, %v45
    %vm171 = vcmp.eq.s32.totalorder %v135, %v45
    %vm172 = vcmp.eq.s32.totalorder %v138, %v45
    %vm173 = vcmp.eq.s32.totalorder %v141, %v45
    %v174 = vsel %vm142, 1, 0
    %v175 = vsel %vm143, 1, 0
    %v176 = vsel %vm144, 1, 0
    %v177 = vsel %vm145, 1, 0
    %v178 = vsel %vm146, 1, 0
    %v179 = vsel %vm147, 1, 0
    %v180 = vsel %vm148, 1, 0
    %v181 = vsel %vm149, 1, 0
    %v182 = vsel %vm150, 1, 0
    %v183 = vsel %vm151, 1, 0
    %v184 = vsel %vm152, 1, 0
    %v185 = vsel %vm153, 1, 0
    %v186 = vsel %vm154, 1, 0
    %v187 = vsel %vm155, 1, 0
    %v188 = vsel %vm156, 1, 0
    %v189 = vsel %vm157, 1, 0
    %v190 = vsel %vm158, 1, 0
    %v191 = vsel %vm159, 1, 0
    %v192 = vsel %vm160, 1, 0
    %v193 = vsel %vm161, 1, 0
    %v194 = vsel %vm162, 1, 0
    %v195 = vsel %vm163, 1, 0
    %v196 = vsel %vm164, 1, 0
    %v197 = vsel %vm165, 1, 0
    %v198 = vsel %vm166, 1, 0
    %v199 = vsel %vm167, 1, 0
    %v200 = vsel %vm168, 1, 0
    %v201 = vsel %vm169, 1, 0
    %v202 = vsel %vm170, 1, 0
    %v203 = vsel %vm171, 1, 0
    %v204 = vsel %vm172, 1, 0
    %v205 = vsel %vm173, 1, 0
    %v206 = vcvt.s32.f32 %v174
    %v207 = vcvt.s32.f32 %v175
    %v208 = vcvt.s32.f32 %v176
    %v209 = vcvt.s32.f32 %v177
    %v210 = vcvt.s32.f32 %v178
    %v211 = vcvt.s32.f32 %v179
    %v212 = vcvt.s32.f32 %v180
    %v213 = vcvt.s32.f32 %v181
    %v214 = vcvt.s32.f32 %v182
    %v215 = vcvt.s32.f32 %v183
    %v216 = vcvt.s32.f32 %v184
    %v217 = vcvt.s32.f32 %v185
    %v218 = vcvt.s32.f32 %v186
    %v219 = vcvt.s32.f32 %v187
    %v220 = vcvt.s32.f32 %v188
    %v221 = vcvt.s32.f32 %v189
    %v222 = vcvt.s32.f32 %v190
    %v223 = vcvt.s32.f32 %v191
    %v224 = vcvt.s32.f32 %v192
    %v225 = vcvt.s32.f32 %v193
    %v226 = vcvt.s32.f32 %v194
    %v227 = vcvt.s32.f32 %v195
    %v228 = vcvt.s32.f32 %v196
    %v229 = vcvt.s32.f32 %v197
    %v230 = vcvt.s32.f32 %v198
    %v231 = vcvt.s32.f32 %v199
    %v232 = vcvt.s32.f32 %v200
    %v233 = vcvt.s32.f32 %v201
    %v234 = vcvt.s32.f32 %v202
    %v235 = vcvt.s32.f32 %v203
    %v236 = vcvt.s32.f32 %v204
    %v237 = vcvt.s32.f32 %v205
    %v238 = vld [vmem:[%s1] sm:$0xff]
    %v239 = vld [vmem:[%s1 + $0x8] sm:$0xff]
    %v240 = vld [vmem:[%s1 + $0x10] sm:$0xff]
    %v241 = vld [vmem:[%s1 + $0x18] sm:$0xff]
    %v242 = vld [vmem:[%s1 + $0x20] sm:$0xff]
    %v243 = vld [vmem:[%s1 + $0x28] sm:$0xff]
    %v244 = vld [vmem:[%s1 + $0x30] sm:$0xff]
    %v245 = vld [vmem:[%s1 + $0x38] sm:$0xff]
    %v246 = vld [vmem:[%s1 + $0x40] sm:$0xff]
    %v247 = vld [vmem:[%s1 + $0x48] sm:$0xff]
    %v248 = vld [vmem:[%s1 + $0x50] sm:$0xff]
    %v249 = vld [vmem:[%s1 + $0x58] sm:$0xff]
    %v250 = vld [vmem:[%s1 + $0x60] sm:$0xff]
    %v251 = vld [vmem:[%s1 + $0x68] sm:$0xff]
    %v252 = vld [vmem:[%s1 + $0x70] sm:$0xff]
    %v253 = vld [vmem:[%s1 + $0x78] sm:$0xff]
    %254 = vmatprep.subr.mxu0 0.0
    %255 = vmatpush1.msra.mxu0 %v238
    %256 = vmatprep.subr.mxu0 0.0
    %257 = vmatpush1.msra.mxu0 %v239
    %258 = vmatprep.subr.mxu0 0.0
    %259 = vmatpush1.msra.mxu0 %v240
    %260 = vmatprep.subr.mxu0 0.0
    %261 = vmatpush1.msra.mxu0 %v241
    %262 = vmatprep.subr.mxu0 0.0
    %263 = vmatpush1.msra.mxu0 %v242
    %264 = vmatprep.subr.mxu0 0.0
    %265 = vmatpush1.msra.mxu0 %v243
    %266 = vmatprep.subr.mxu0 0.0
    %267 = vmatpush1.msra.mxu0 %v244
    %268 = vmatprep.subr.mxu0 0.0
    %269 = vmatpush1.msra.mxu0 %v245
    %270 = vmatprep.subr.mxu0 0.0
    %271 = vmatpush1.msra.mxu0 %v246
    %272 = vmatprep.subr.mxu0 0.0
    %273 = vmatpush1.msra.mxu0 %v247
    %274 = vmatprep.subr.mxu0 0.0
    %275 = vmatpush1.msra.mxu0 %v248
    %276 = vmatprep.subr.mxu0 0.0
    %277 = vmatpush1.msra.mxu0 %v249
    %278 = vmatprep.subr.mxu0 0.0
    %279 = vmatpush1.msra.mxu0 %v250
    %280 = vmatprep.subr.mxu0 0.0
    %281 = vmatpush1.msra.mxu0 %v251
    %282 = vmatprep.subr.mxu0 0.0
    %283 = vmatpush1.msra.mxu0 %v252
    %284 = vmatprep.subr.mxu0 0.0
    %285 = vmatpush1.msra.mxu0 %v253
    %286 = vmatprep.subr.mxu0 0.0
    %287 = vmatpush1.msra.mxu0 0.0
    %288 = vmatprep.subr.mxu0 0.0
    %289 = vmatpush1.msra.mxu0 0.0
    %290 = vmatprep.subr.mxu0 0.0
    %291 = vmatpush1.msra.mxu0 0.0
    %292 = vmatprep.subr.mxu0 0.0
    %293 = vmatpush1.msra.mxu0 0.0
    %294 = vmatprep.subr.mxu0 0.0
    %295 = vmatpush1.msra.mxu0 0.0
    %296 = vmatprep.subr.mxu0 0.0
    %297 = vmatpush1.msra.mxu0 0.0
    %298 = vmatprep.subr.mxu0 0.0
    %299 = vmatpush1.msra.mxu0 0.0
    %300 = vmatprep.subr.mxu0 0.0
    %301 = vmatpush1.msra.mxu0 0.0
    %302 = vmatprep.subr.mxu0 0.0
    %303 = vmatpush1.msra.mxu0 0.0
    %304 = vmatprep.subr.mxu0 0.0
    %305 = vmatpush1.msra.mxu0 0.0
    %306 = vmatprep.subr.mxu0 0.0
    %307 = vmatpush1.msra.mxu0 0.0
    %308 = vmatprep.subr.mxu0 0.0
    %309 = vmatpush1.msra.mxu0 0.0
    %310 = vmatprep.subr.mxu0 0.0
    %311 = vmatpush1.msra.mxu0 0.0
    %312 = vmatprep.subr.mxu0 0.0
    %313 = vmatpush1.msra.mxu0 0.0
    %314 = vmatprep.subr.mxu0 0.0
    %315 = vmatpush1.msra.mxu0 0.0
    %316 = vmatprep.subr.mxu0 0.0
    %317 = vmatpush1.msra.mxu0 0.0
    %318 = vmatprep.mubr.f32.mxu0 0.0
    %319 = vmatmul.mubr.f32.gmra.mrb[0].mxu0 %v206
    %v320 = vpop.f32.mrb[0].mxu0
    %v321 = vadd.f32 0.0, %v320
    %v322 = vpop.f32.mrb[0].mxu0
    %323 = vmatprep.mubr.f32.mxu0 0.0
    %324 = vmatmul.mubr.f32.gmra.mrb[0].mxu0 %v207
    %v325 = vpop.f32.mrb[0].mxu0
    %v326 = vadd.f32 0.0, %v325
    %v327 = vpop.f32.mrb[0].mxu0
    %328 = vmatprep.mubr.f32.mxu0 0.0
    %329 = vmatmul.mubr.f32.gmra.mrb[0].mxu0 %v208
    %v330 = vpop.f32.mrb[0].mxu0
    %v331 = vadd.f32 0.0, %v330
    %v332 = vpop.f32.mrb[0].mxu0
    %333 = vmatprep.mubr.f32.mxu0 0.0
    %334 = vmatmul.mubr.f32.gmra.mrb[0].mxu0 %v209
    %v335 = vpop.f32.mrb[0].mxu0
    %v336 = vadd.f32 0.0, %v335
    %v337 = vpop.f32.mrb[0].mxu0
    %338 = vmatprep.mubr.f32.mxu0 0.0
    %339 = vmatmul.mubr.f32.gmra.mrb[0].mxu0 %v210
    %v340 = vpop.f32.mrb[0].mxu0
    %v341 = vadd.f32 0.0, %v340
    %v342 = vpop.f32.mrb[0].mxu0
    %343 = vmatprep.mubr.f32.mxu0 0.0
    %344 = vmatmul.mubr.f32.gmra.mrb[0].mxu0 %v211
    %v345 = vpop.f32.mrb[0].mxu0
    %v346 = vadd.f32 0.0, %v345
    %v347 = vpop.f32.mrb[0].mxu0
    %348 = vmatprep.mubr.f32.mxu0 0.0
    %349 = vmatmul.mubr.f32.gmra.mrb[0].mxu0 %v212
    %v350 = vpop.f32.mrb[0].mxu0
    %v351 = vadd.f32 0.0, %v350
    %v352 = vpop.f32.mrb[0].mxu0
    %353 = vmatprep.mubr.f32.mxu0 0.0
    %354 = vmatmul.mubr.f32.gmra.mrb[0].mxu0 %v213
    %v355 = vpop.f32.mrb[0].mxu0
    %v356 = vadd.f32 0.0, %v355
    %v357 = vpop.f32.mrb[0].mxu0
    %358 = vmatprep.mubr.f32.mxu0 0.0
    %359 = vmatmul.mubr.f32.gmra.mrb[0].mxu0 %v214
    %v360 = vpop.f32.mrb[0].mxu0
    %v361 = vadd.f32 0.0, %v360
    %v362 = vpop.f32.mrb[0].mxu0
    %363 = vmatprep.mubr.f32.mxu0 0.0
    %364 = vmatmul.mubr.f32.gmra.mrb[0].mxu0 %v215
    %v365 = vpop.f32.mrb[0].mxu0
    %v366 = vadd.f32 0.0, %v365
    %v367 = vpop.f32.mrb[0].mxu0
    %368 = vmatprep.mubr.f32.mxu0 0.0
    %369 = vmatmul.mubr.f32.gmra.mrb[0].mxu0 %v216
    %v370 = vpop.f32.mrb[0].mxu0
    %v371 = vadd.f32 0.0, %v370
    %v372 = vpop.f32.mrb[0].mxu0
    %373 = vmatprep.mubr.f32.mxu0 0.0
    %374 = vmatmul.mubr.f32.gmra.mrb[0].mxu0 %v217
    %v375 = vpop.f32.mrb[0].mxu0
    %v376 = vadd.f32 0.0, %v375
    %v377 = vpop.f32.mrb[0].mxu0
    %378 = vmatprep.mubr.f32.mxu0 0.0
    %379 = vmatmul.mubr.f32.gmra.mrb[0].mxu0 %v218
    %v380 = vpop.f32.mrb[0].mxu0
    %v381 = vadd.f32 0.0, %v380
    %v382 = vpop.f32.mrb[0].mxu0
    %383 = vmatprep.mubr.f32.mxu0 0.0
    %384 = vmatmul.mubr.f32.gmra.mrb[0].mxu0 %v219
    %v385 = vpop.f32.mrb[0].mxu0
    %v386 = vadd.f32 0.0, %v385
    %v387 = vpop.f32.mrb[0].mxu0
    %388 = vmatprep.mubr.f32.mxu0 0.0
    %389 = vmatmul.mubr.f32.gmra.mrb[0].mxu0 %v220
    %v390 = vpop.f32.mrb[0].mxu0
    %v391 = vadd.f32 0.0, %v390
    %v392 = vpop.f32.mrb[0].mxu0
    %393 = vmatprep.mubr.f32.mxu0 0.0
    %394 = vmatmul.mubr.f32.gmra.mrb[0].mxu0 %v221
    %v395 = vpop.f32.mrb[0].mxu0
    %v396 = vadd.f32 0.0, %v395
    %v397 = vpop.f32.mrb[0].mxu0
    %398 = vmatprep.mubr.f32.mxu0 0.0
    %399 = vmatmul.mubr.f32.gmra.mrb[0].mxu0 %v222
    %v400 = vpop.f32.mrb[0].mxu0
    %v401 = vadd.f32 0.0, %v400
    %v402 = vpop.f32.mrb[0].mxu0
    %403 = vmatprep.mubr.f32.mxu0 0.0
    %404 = vmatmul.mubr.f32.gmra.mrb[0].mxu0 %v223
    %v405 = vpop.f32.mrb[0].mxu0
    %v406 = vadd.f32 0.0, %v405
    %v407 = vpop.f32.mrb[0].mxu0
    %408 = vmatprep.mubr.f32.mxu0 0.0
    %409 = vmatmul.mubr.f32.gmra.mrb[0].mxu0 %v224
    %v410 = vpop.f32.mrb[0].mxu0
    %v411 = vadd.f32 0.0, %v410
    %v412 = vpop.f32.mrb[0].mxu0
    %413 = vmatprep.mubr.f32.mxu0 0.0
    %414 = vmatmul.mubr.f32.gmra.mrb[0].mxu0 %v225
    %v415 = vpop.f32.mrb[0].mxu0
    %v416 = vadd.f32 0.0, %v415
    %v417 = vpop.f32.mrb[0].mxu0
    %418 = vmatprep.mubr.f32.mxu0 0.0
    %419 = vmatmul.mubr.f32.gmra.mrb[0].mxu0 %v226
    %v420 = vpop.f32.mrb[0].mxu0
    %v421 = vadd.f32 0.0, %v420
    %v422 = vpop.f32.mrb[0].mxu0
    %423 = vmatprep.mubr.f32.mxu0 0.0
    %424 = vmatmul.mubr.f32.gmra.mrb[0].mxu0 %v227
    %v425 = vpop.f32.mrb[0].mxu0
    %v426 = vadd.f32 0.0, %v425
    %v427 = vpop.f32.mrb[0].mxu0
    %428 = vmatprep.mubr.f32.mxu0 0.0
    %429 = vmatmul.mubr.f32.gmra.mrb[0].mxu0 %v228
    %v430 = vpop.f32.mrb[0].mxu0
    %v431 = vadd.f32 0.0, %v430
    %v432 = vpop.f32.mrb[0].mxu0
    %433 = vmatprep.mubr.f32.mxu0 0.0
    %434 = vmatmul.mubr.f32.gmra.mrb[0].mxu0 %v229
    %v435 = vpop.f32.mrb[0].mxu0
    %v436 = vadd.f32 0.0, %v435
    %v437 = vpop.f32.mrb[0].mxu0
    %438 = vmatprep.mubr.f32.mxu0 0.0
    %439 = vmatmul.mubr.f32.gmra.mrb[0].mxu0 %v230
    %v440 = vpop.f32.mrb[0].mxu0
    %v441 = vadd.f32 0.0, %v440
    %v442 = vpop.f32.mrb[0].mxu0
    %443 = vmatprep.mubr.f32.mxu0 0.0
    %444 = vmatmul.mubr.f32.gmra.mrb[0].mxu0 %v231
    %v445 = vpop.f32.mrb[0].mxu0
    %v446 = vadd.f32 0.0, %v445
    %v447 = vpop.f32.mrb[0].mxu0
    %448 = vmatprep.mubr.f32.mxu0 0.0
    %449 = vmatmul.mubr.f32.gmra.mrb[0].mxu0 %v232
    %v450 = vpop.f32.mrb[0].mxu0
    %v451 = vadd.f32 0.0, %v450
    %v452 = vpop.f32.mrb[0].mxu0
    %453 = vmatprep.mubr.f32.mxu0 0.0
    %454 = vmatmul.mubr.f32.gmra.mrb[0].mxu0 %v233
    %v455 = vpop.f32.mrb[0].mxu0
    %v456 = vadd.f32 0.0, %v455
    %v457 = vpop.f32.mrb[0].mxu0
    %458 = vmatprep.mubr.f32.mxu0 0.0
    %459 = vmatmul.mubr.f32.gmra.mrb[0].mxu0 %v234
    %v460 = vpop.f32.mrb[0].mxu0
    %v461 = vadd.f32 0.0, %v460
    %v462 = vpop.f32.mrb[0].mxu0
    %463 = vmatprep.mubr.f32.mxu0 0.0
    %464 = vmatmul.mubr.f32.gmra.mrb[0].mxu0 %v235
    %v465 = vpop.f32.mrb[0].mxu0
    %v466 = vadd.f32 0.0, %v465
    %v467 = vpop.f32.mrb[0].mxu0
    %468 = vmatprep.mubr.f32.mxu0 0.0
    %469 = vmatmul.mubr.f32.gmra.mrb[0].mxu0 %v236
    %v470 = vpop.f32.mrb[0].mxu0
    %v471 = vadd.f32 0.0, %v470
    %v472 = vpop.f32.mrb[0].mxu0
    %473 = vmatprep.mubr.f32.mxu0 0.0
    %474 = vmatmul.mubr.f32.gmra.mrb[0].mxu0 %v237
    %v475 = vpop.f32.mrb[0].mxu0
    %v476 = vadd.f32 0.0, %v475
    %v477 = vpop.f32.mrb[0].mxu0
    %478 = vdwg.mxu0
    %479 = vst [vmem:[#allocation2] sm:$0xff] %v321
    %480 = vst [vmem:[#allocation2 + $0x8] sm:$0xff] %v326
    %481 = vst [vmem:[#allocation2 + $0x10] sm:$0xff] %v331
    %482 = vst [vmem:[#allocation2 + $0x18] sm:$0xff] %v336
    %483 = vst [vmem:[#allocation2 + $0x20] sm:$0xff] %v341
    %484 = vst [vmem:[#allocation2 + $0x28] sm:$0xff] %v346
    %485 = vst [vmem:[#allocation2 + $0x30] sm:$0xff] %v351
    %486 = vst [vmem:[#allocation2 + $0x38] sm:$0xff] %v356
    %487 = vst [vmem:[#allocation2 + $0x40] sm:$0xff] %v361
    %488 = vst [vmem:[#allocation2 + $0x48] sm:$0xff] %v366
    %489 = vst [vmem:[#allocation2 + $0x50] sm:$0xff] %v371
    %490 = vst [vmem:[#allocation2 + $0x58] sm:$0xff] %v376
    %491 = vst [vmem:[#allocation2 + $0x60] sm:$0xff] %v381
    %492 = vst [vmem:[#allocation2 + $0x68] sm:$0xff] %v386
    %493 = vst [vmem:[#allocation2 + $0x70] sm:$0xff] %v391
    %494 = vst [vmem:[#allocation2 + $0x78] sm:$0xff] %v396
    %495 = vst [vmem:[#allocation2 + $0x80] sm:$0xff] %v401
    %496 = vst [vmem:[#allocation2 + $0x88] sm:$0xff] %v406
    %497 = vst [vmem:[#allocation2 + $0x90] sm:$0xff] %v411
    %498 = vst [vmem:[#allocation2 + $0x98] sm:$0xff] %v416
    %499 = vst [vmem:[#allocation2 + $0xa0] sm:$0xff] %v421
    %500 = vst [vmem:[#allocation2 + $0xa8] sm:$0xff] %v426
    %501 = vst [vmem:[#allocation2 + $0xb0] sm:$0xff] %v431
    %502 = vst [vmem:[#allocation2 + $0xb8] sm:$0xff] %v436
    %503 = vst [vmem:[#allocation2 + $0xc0] sm:$0xff] %v441
    %504 = vst [vmem:[#allocation2 + $0xc8] sm:$0xff] %v446
    %505 = vst [vmem:[#allocation2 + $0xd0] sm:$0xff] %v451
    %506 = vst [vmem:[#allocation2 + $0xd8] sm:$0xff] %v456
    %507 = vst [vmem:[#allocation2 + $0xe0] sm:$0xff] %v461
    %508 = vst [vmem:[#allocation2 + $0xe8] sm:$0xff] %v466
    %509 = vst [vmem:[#allocation2 + $0xf0] sm:$0xff] %v471
    %510 = vst [vmem:[#allocation2 + $0xf8] sm:$0xff] %v476
    // Predicated region
    $region10: #{tpu_custom_call.1} parent=1 // pred_check
      _
    $region11: #{tpu_custom_call.1} parent=1 // pred_check_branch
      %512 = sbr.rel (0) target = $region13
    $region12: #{tpu_custom_call.1} parent=1 // pred_region
      %s514 = ssub.s32 4096, 4096
      %515 = vsyncadd [#allocation3], %s514
      %s516 = sshll.u32 [#allocation2], 4
      %s517 = int_to_ptr.vmem [resolvable:$true] %s516
      %522 = dma.vmem_to_hbm [thread:$0]  %s517, 4096, %s2, [#allocation3], 128, 128, 8
    $region13: #{tpu_custom_call.1} parent=1 // pred_fallthru
      _
    // Predicated region
    $region14: #{tpu_custom_call.1} parent=1 // pred_check
      _
    $region15: #{tpu_custom_call.1} parent=1 // pred_check_branch
      %524 = sbr.rel (0) target = $region17
    $region16: #{tpu_custom_call.1} parent=1 // pred_region
      %525 = dma.done [#allocation3], 4096
    $region17: #{tpu_custom_call.1} parent=1 // pred_fallthru
      _
    %526 = vsyncpa [#allocation3], 1

</llo_original>
